<compile_context>
chip_gen: v6e
topology: v6e:2x2x1
jax: 0.10.0
libtpu: 0.0.40
codegen_flags: <defaults>
</compile_context>

<pallas_src>
import math

import jax
import jax.numpy as jnp
from jax.experimental import pallas as pl
from jax.experimental.pallas import tpu as pltpu


_LANES = 128
_SUBLANES = 8


def _drop_path_kernel(scale_ref, x_ref, o_ref):
    """o = x * scale  (per-sample scale broadcast across the hidden dim).

    scale_ref : VMEM (tb, 1)   keep_b / keep_prob per sample, already x.dtype
    x_ref     : VMEM (tb, tm)  tile of the flattened (B, M) input
    o_ref     : VMEM (tb, tm)  output tile
    """
    o_ref[...] = x_ref[...] * scale_ref[...]


def _cdiv(a, b):
    return -(-a // b)


def _round_up(a, b):
    return _cdiv(a, b) * b


def _vmem_budget():
    """(per-buffer tile byte target, scoped vmem limit), generation-gated."""
    # Safe everywhere (v7x: 64 MiB physical VMEM, 32 MiB scoped default).
    target, limit = 4 * 1024 * 1024, 32 * 1024 * 1024
    try:
        cap = getattr(pltpu.get_tpu_info(), "vmem_capacity_bytes", None)
        if cap is not None and cap >= 128 * 1024 * 1024:
            # v5e / v6e: 128 MiB physical VMEM -> bigger tiles, fewer steps.
            target, limit = 8 * 1024 * 1024, 64 * 1024 * 1024
    except Exception:
        pass
    return target, limit


def _choose_tiles(B, M, dbytes, target_bytes):
    """Pick a (tb, tm) block for a (B, M) array.

    Constraints: tb is a multiple of 8 or equal to B; tm is a multiple of 128
    or equal to M.  VMEM footprint per buffer is roughly
    round_up(tb, 8) * round_up(tm, 128) * dbytes, which we keep <= target.
    """
    cols_budget = max(
        _LANES, (target_bytes // (_SUBLANES * dbytes)) // _LANES * _LANES)
    if M <= cols_budget:
        tm = M                                    # full sample width per tile
        m_pad = _round_up(M, _LANES)
        rows_budget = max(
            _SUBLANES,
            (target_bytes // (m_pad * dbytes)) // _SUBLANES * _SUBLANES)
        if B <= rows_budget:
            tb = B
        else:
            nb = _cdiv(B, rows_budget)            # balanced batch steps
            tb = min(B, _round_up(_cdiv(B, nb), _SUBLANES))
    else:
        tb = B if B < _SUBLANES else _SUBLANES
        nm = _cdiv(M, cols_budget)                # balanced column steps
        tm = max(_LANES, _round_up(_cdiv(M, nm), _LANES))
    return tb, tm


def drop_path(x, drop_prob, training, key):
    """JAX/Pallas equivalent of the torch drop_path forward."""
    if drop_prob is None or float(drop_prob) == 0.0 or not training:
        return x
    if float(drop_prob) >= 1.0:
        # Every sample dropped.  (The torch reference divides by zero here and
        # produces NaN; zeros are the intended "always drop" semantics.)
        return jnp.zeros_like(x)

    keep_prob = 1.0 - float(drop_prob)
    B = int(x.shape[0])
    M = int(math.prod(x.shape[1:]))
    if B == 0 or M == 0:
        return x

    # TODO(synk): when DropPath sits on a residual path, fusing this multiply
    # into the adjacent residual add (or emitting plain x * scale so XLA fuses
    # it) removes the standalone HBM round trip entirely; kept as a kernel per
    # spec.

    # Per-sample Bernoulli(keep_prob), binarized exactly like torch:
    # floor(keep_prob + U[0,1)).  Cast the scale to x.dtype once here (B
    # elements) so the kernel does no per-step cast.
    u = jax.random.uniform(key, (B,), dtype=jnp.float32)
    keep = jnp.floor(keep_prob + u)
    scale = (keep * jnp.float32(1.0 / keep_prob)).astype(x.dtype).reshape(B, 1)

    x2 = x.reshape(B, M)
    dbytes = jnp.dtype(x.dtype).itemsize
    target_bytes, vmem_limit = _vmem_budget()
    tb, tm = _choose_tiles(B, M, dbytes, target_bytes)

    # Ensure medium/large tensors get several grid steps (feeds both v7x
    # TensorCores and gives the pipeline in/out DMA to overlap); tiny tensors
    # stay at a single step to avoid per-step overhead on single-TC chips.
    total_bytes = B * M * dbytes
    if total_bytes >= (4 << 20):
        min_steps = 4
    elif total_bytes >= (64 << 10):
        min_steps = 2
    else:
        min_steps = 1
    n_b, n_m = _cdiv(B, tb), _cdiv(M, tm)
    while n_b * n_m < min_steps:
        want_m = _cdiv(min_steps, n_b)
        new_tm = max(_LANES, _round_up(_cdiv(M, want_m), _LANES))
        if new_tm >= tm:
            break  # M axis can't be split further; not worth splitting B here
        tm = new_tm
        n_m = _cdiv(M, tm)

    grid = (n_b, n_m)

    y2 = pl.pallas_call(
        _drop_path_kernel,
        out_shape=jax.ShapeDtypeStruct((B, M), x.dtype),
        grid=grid,
        in_specs=[
            pl.BlockSpec((tb, 1), lambda b, m: (b, 0)),
            pl.BlockSpec((tb, tm), lambda b, m: (b, m)),
        ],
        out_specs=pl.BlockSpec((tb, tm), lambda b, m: (b, m)),
        compiler_params=pltpu.CompilerParams(
            dimension_semantics=("parallel", "parallel"),
            vmem_limit_bytes=vmem_limit,
        ),
    )(scale, x2)

    return y2.reshape(x.shape)


class DropPath:
    """Drop paths (Stochastic Depth) per sample (main path of residual blocks)."""

    def __init__(self, drop_prob=None):
        self.drop_prob = drop_prob
        self.training = True  # mimic nn.Module training flag

    def __call__(self, x, key):
        return drop_path(x, self.drop_prob, self.training, key)

    def extra_repr(self):
        return "p={}".format(self.drop_prob)


if __name__ == "__main__":
    key = jax.random.PRNGKey(0)
    k_x, k_drop = jax.random.split(key)

    B, N, D = 2, 8, 32  # small ViT-token shapes: batch=2, seq=8, hidden=32
    x = jax.random.normal(k_x, (B, N, D), dtype=jnp.float32)

    mod = DropPath(drop_prob=0.25)

    # Training path: kernel applies per-sample mask and 1/keep_prob scaling.
    y = jax.block_until_ready(mod(x, k_drop))

    # Pure-JAX reference for the training path (same RNG construction).
    keep_prob = 1.0 - 0.25
    u = jax.random.uniform(k_drop, (B,), dtype=jnp.float32)
    keep = jnp.floor(keep_prob + u)
    y_ref = x * (keep / keep_prob)[:, None, None]
    assert y.shape == x.shape
    assert jnp.allclose(y, y_ref, atol=1e-6, rtol=1e-6), "kernel mismatch vs reference"

    # Ragged-shape check: M = 7*24 = 168 (not a multiple of 128) exercises the
    # masked last block instead of the old pad/slice path.
    x_odd = jax.random.normal(k_x, (3, 7, 24), dtype=jnp.float32)
    y_odd = jax.block_until_ready(mod(x_odd, k_drop))
    u3 = jax.random.uniform(k_drop, (3,), dtype=jnp.float32)
    keep3 = jnp.floor(keep_prob + u3)
    y_odd_ref = x_odd * (keep3 / keep_prob)[:, None, None]
    assert jnp.allclose(y_odd, y_odd_ref, atol=1e-6, rtol=1e-6), "ragged-M mismatch"

    # Eval path (training=False) must return x unchanged, like the torch module.
    mod.training = False
    y_eval = jax.block_until_ready(mod(x, k_drop))
    assert jnp.allclose(y_eval, x), "eval path must be identity"

    print("KERNEL_OK")
</pallas_src>

<mosaic_0001>
module attributes {stable_mosaic.version = 11 : i64} {
  func.func @_drop_path_kernel(%arg0: i32, %arg1: i32, %arg2: memref<2x1xf32, #tpu.memory_space<vmem>>, %arg3: memref<2x256xf32, #tpu.memory_space<vmem>>, %arg4: memref<2x256xf32, #tpu.memory_space<vmem>>) attributes {dimension_semantics = [#tpu.dimension_semantics<parallel>, #tpu.dimension_semantics<parallel>], iteration_bounds = array<i64: 1, 1>, scalar_prefetch = 0 : i64, scratch_operands = 0 : i64, tpu.core_type = #tpu.core_type<tc>, window_params = [{transform_indices = @transform_0, window_bounds = array<i64: 2, 1>}, {transform_indices = @transform_1, window_bounds = array<i64: 2, 256>}, {transform_indices = @transform_2, window_bounds = array<i64: 2, 256>}]} {
    %c0 = arith.constant 0 : index
    %c0_0 = arith.constant 0 : index
    %0 = vector.load %arg3[%c0, %c0_0] : memref<2x256xf32, #tpu.memory_space<vmem>>, vector<2x256xf32>
    %c0_1 = arith.constant 0 : index
    %c0_2 = arith.constant 0 : index
    %1 = vector.load %arg2[%c0_1, %c0_2] : memref<2x1xf32, #tpu.memory_space<vmem>>, vector<2x1xf32>
    %2 = vector.broadcast %1 : vector<2x1xf32> to vector<2x256xf32>
    %3 = arith.mulf %0, %2 : vector<2x256xf32>
    %c0_3 = arith.constant 0 : index
    %c0_4 = arith.constant 0 : index
    %4 = vector.load %arg4[%c0_3, %c0_4] : memref<2x256xf32, #tpu.memory_space<vmem>>, vector<2x256xf32>
    tpu.vector_store %arg4[%c0_3, %c0_4], %3 {strides = array<i32>} : memref<2x256xf32, #tpu.memory_space<vmem>>, vector<2x256xf32>,
    return
  }
  func.func @transform_0(%arg0: i32, %arg1: i32) -> (i32, i32) {
    %c0_i32 = arith.constant 0 : i32
    %c0_i32_0 = arith.constant 0 : i32
    return %arg0, %c0_i32 : i32, i32
  }
  func.func @transform_1(%arg0: i32, %arg1: i32) -> (i32, i32) {
    %c0_i32 = arith.constant 0 : i32
    return %arg0, %arg1 : i32, i32
  }
  func.func @transform_2(%arg0: i32, %arg1: i32) -> (i32, i32) {
    %c0_i32 = arith.constant 0 : i32
    return %arg0, %arg1 : i32, i32
  }
}

</mosaic_0001>

<llo_original>
// kernel: tpu_custom_call.1
$region0: #{tpu_custom_call.1}
  #allocation0 [shape = 'u32[]', space=smem, size = 0x4, offset = 0x4, fixed_abs, tag = 'smem constant byte address 0x4 - core index']
  #allocation1 [shape = 'u32[144,128]{1,0:T(1,128)}', space=vmem, size = 0x12000, scoped, tag = 'internal scratch']
  %s0 = inlined_call_operand.vmem [shape: f32[2,1], index: 0, kind: input, shape index: {}]
  %s1 = inlined_call_operand.vmem [shape: f32[2,256], index: 1, kind: input, shape index: {}]
  %s2 = inlined_call_operand.hbm [shape: f32[2,256], index: 2, kind: output, shape index: {}]
  %s3 = sld [smem:[#allocation0]]
  $region18: #{tpu_custom_call.1} parent=0
    _
  %s5 = ssub.s32 1, %s3
  %s6 = scalar_select 0, %s5, %s3
  $region1: #{tpu_custom_call.1} parent=0
    #allocation2 [shape = 'u8[2048]{0}', space=vmem, size = 0x800, scoped, tag = 'output window, operand 0, single buffered']
    #allocation3 [shape = 's32[1]{0}', space=sflag, size = 0x4, scoped, tag = 'scoped memory for tpu_custom_call.1']
    %7 = vsyncpa [#allocation3], 0
    // Predicated region
    $region2: #{tpu_custom_call.1} parent=1 // pred_check
      _
    $region3: #{tpu_custom_call.1} parent=1 // pred_check_branch
      %9 = sbr.rel (0) target = $region5
    $region4: #{tpu_custom_call.1} parent=1 // pred_region
      _
    $region5: #{tpu_custom_call.1} parent=1 // pred_fallthru
      _
    // Predicated region
    $region6: #{tpu_custom_call.1} parent=1 // pred_check
      _
    $region7: #{tpu_custom_call.1} parent=1 // pred_check_branch
      %11 = sbr.rel (0) target = $region9
    $region8: #{tpu_custom_call.1} parent=1 // pred_region
      _
    $region9: #{tpu_custom_call.1} parent=1 // pred_fallthru
      _
    %v12 = vld [vmem:[%s1] sm:$0xf]
    %v13 = vld [vmem:[%s0] sm:$0x3]
    %15 = vset.pattern.permute.xlu0 0
    %16 = vperm.xlu0 %15, %v13
    %v17 = vpop.permute.xlu0 %16
    %v19 = vunpack.c.l.s4 269488144
    %v20 = vunpack.c.0.s8 %v19
    %v21 = vlaneseq
    %v22 = vshrl.u32 %v21, 7
    %v23 = vsub.s32 %v20, %v22
    %v24 = vrot.slane %v17, %v23
    %v26 = vmul.f32 %v12, %v24
    %27 = vst [vmem:[#allocation2] sm:$0xf] %v26
    // Predicated region
    $region10: #{tpu_custom_call.1} parent=1 // pred_check
      _
    $region11: #{tpu_custom_call.1} parent=1 // pred_check_branch
      %29 = sbr.rel (0) target = $region13
    $region12: #{tpu_custom_call.1} parent=1 // pred_region
      %s31 = ssub.s32 64, 64
      %32 = vsyncadd [#allocation3], %s31
      %s34 = sshll.u32 [#allocation2], 4
      %s35 = int_to_ptr.vmem [resolvable:$true] %s34
      %37 = dma.vmem_to_hbm [thread:$0]  %s35, 64, %s2, [#allocation3]
    $region13: #{tpu_custom_call.1} parent=1 // pred_fallthru
      _
    // Predicated region
    $region14: #{tpu_custom_call.1} parent=1 // pred_check
      _
    $region15: #{tpu_custom_call.1} parent=1 // pred_check_branch
      %39 = sbr.rel (0) target = $region17
    $region16: #{tpu_custom_call.1} parent=1 // pred_region
      %40 = dma.done [#allocation3], 64
    $region17: #{tpu_custom_call.1} parent=1 // pred_fallthru
      _
    %41 = vsyncpa [#allocation3], 1

</llo_original>
